<compile_context>
chip_gen: v7x
topology: tpu7x:2x2x1
jax: 0.10.0
libtpu: 0.0.40
codegen_flags: <defaults>
</compile_context>

<pallas_src>
import functools

import jax
import jax.numpy as jnp
from jax.experimental import pallas as pl
from jax.experimental.pallas import tpu as pltpu

BN_EPS = 1e-5
LANE = 128


def _round_up(v, m):
    return (v + m - 1) // m * m


def _vmem_capacity_bytes():
    # Generation-aware physical VMEM: 128 MiB on v5e/v6e, 64 MiB per TC on v7x.
    try:
        return int(pltpu.get_tpu_info().vmem_capacity_bytes)
    except Exception:
        return 64 << 20  # conservative fallback (v7x floor)


def infomax_ica_kernel(x_ref, w_ref, gamma_ref, beta_ref, o_ref, *, inv_b):
    # x_ref:     (B, Kp)    full-K operand, resident (single-buffered) across grid
    # w_ref:     (TN, Kp)   row tile of W in PyTorch (out, in) layout (no transpose)
    # gamma_ref: (1, TN)    BN scale
    # beta_ref:  (1, TN)    BN shift
    # o_ref:     (B, TN)    output tile (lane-dense, TN % 128 == 0)
    #
    # y = x @ W^T expressed by contracting the last dims of both operands, so
    # the weight is consumed directly in its (out, in) layout.
    y = jax.lax.dot_general(
        x_ref[...], w_ref[...],
        dimension_numbers=(((1,), (1,)), ((), ())),
        preferred_element_type=jnp.float32)              # (B, TN) f32 accumulate

    # Fused single-pass batch statistics (per-feature -> no cross-tile reduction).
    # NOTE: E[y^2]-E[y]^2 is fine for roughly-centered ICA inputs; the clamp
    # prevents NaN from cancellation.
    s = jnp.sum(y, axis=0, keepdims=True)                # (1, TN)
    sq = jnp.sum(y * y, axis=0, keepdims=True)           # (1, TN)
    mean = s * inv_b                                      # hoisted 1/B constant
    var = jnp.maximum(sq * inv_b - mean * mean, 0.0)
    inv_std = jax.lax.rsqrt(var + BN_EPS)                 # EUP slot (VALU-free)

    # FMA-shaped affine epilogue: o = y*scale + shift (2 VALU ops / element).
    scale = inv_std * gamma_ref[...]
    shift = beta_ref[...] - mean * scale
    o_ref[...] = (y * scale + shift).astype(o_ref.dtype)


def infomax_ica_forward(x, w1, b1, gamma, beta, *,
                        feature_tile=256, compute_dtype=jnp.bfloat16):
    """Forward pass of infomaxICA.

    x:     (B, n) float32
    w1:    (n_out, n_in) PyTorch Linear weight layout (consumed untransposed)
    b1:    (n,)  Linear bias. With track_running_stats=False BN, an additive
           per-feature bias is exactly cancelled by the batch-mean subtraction
           (and the module inits it to zero), so it is not fed to the kernel.
    gamma, beta: (n,) BatchNorm affine parameters (frozen ones/zeros).
    compute_dtype: MXU operand dtype (accumulation and BN stats are always f32).
           bf16 is MXU-native on v5e/v6e/v7x; pass jnp.float32 for bitwise-f32.
    """
    del b1  # mathematically a no-op under always-on batch normalization

    B, n = x.shape
    itemsize = jnp.dtype(compute_dtype).itemsize

    # Decoupled padding: contraction dim only to a LANE multiple, output
    # features to a tn multiple.
    k_pad = _round_up(n, LANE)
    tn = _round_up(min(max(feature_tile, LANE), _round_up(n, LANE)), LANE)
    n_pad = _round_up(n, tn)
    # TODO(synk): on v7x prefer a tn yielding an even grid length (>=2) so the
    # "parallel" axis load-balances across both TensorCores.

    x_c = x.astype(compute_dtype)
    w_c = w1.astype(compute_dtype)
    x_p = x_c if k_pad == n else jnp.pad(x_c, ((0, 0), (0, k_pad - n)))
    w_p = w_c if (n_pad == n and k_pad == n) else jnp.pad(
        w_c, ((0, n_pad - n), (0, k_pad - n)))
    g_p = jnp.pad(gamma.reshape(1, n).astype(jnp.float32),
                  ((0, 0), (0, n_pad - n)))
    be_p = jnp.pad(beta.reshape(1, n).astype(jnp.float32),
                   ((0, 0), (0, n_pad - n)))

    grid = (n_pad // tn,)

    # VMEM budget from actual buffer counts: x single-buffered (grid-invariant),
    # weight/output double-buffered, plus the f32 y intermediate and params.
    vmem_needed = (B * k_pad * itemsize            # x (Buffered(1))
                   + 2 * tn * k_pad * itemsize     # W row tile, double-buffered
                   + 2 * B * tn * 4                # output tile, double-buffered
                   + B * tn * 4                    # f32 y intermediate
                   + 2 * 2 * tn * 4)               # gamma / beta
    vmem_cap = int(_vmem_capacity_bytes() * 0.85)  # leave compiler headroom
    vmem_limit = int(min(max(int(vmem_needed * 1.5), 8 << 20), vmem_cap))
    # TODO(synk): if vmem_needed approaches vmem_cap (huge B*k_pad, esp. v7x's
    # 64 MiB), add a K grid axis ("arbitrary", last) with a (B, tn) f32 VMEM
    # accumulator and run the BN epilogue under pl.when(k == last).

    cost = pl.CostEstimate(
        flops=2 * B * k_pad * n_pad,
        transcendentals=n_pad,
        bytes_accessed=itemsize * (B * k_pad + n_pad * k_pad)
        + 4 * (B * n_pad + 2 * n_pad),
    )

    out = pl.pallas_call(
        functools.partial(infomax_ica_kernel, inv_b=1.0 / B),
        out_shape=jax.ShapeDtypeStruct((B, n_pad), jnp.float32),
        grid=grid,
        in_specs=[
            pl.BlockSpec((B, k_pad), lambda j: (0, 0),
                         pipeline_mode=pl.Buffered(1)),   # x: invariant -> 1 buffer
            pl.BlockSpec((tn, k_pad), lambda j: (j, 0)),  # W row tile (out, in)
            pl.BlockSpec((1, tn), lambda j: (0, j)),      # gamma
            pl.BlockSpec((1, tn), lambda j: (0, j)),      # beta
        ],
        out_specs=pl.BlockSpec((B, tn), lambda j: (0, j)),
        compiler_params=pltpu.CompilerParams(
            dimension_semantics=("parallel",),
            vmem_limit_bytes=vmem_limit,
        ),
        cost_estimate=cost,
    )(x_p, w_p, g_p, be_p)

    return out[:, :n]


def init_params(n, key):
    """Mirror the module's __init__: W1 gets xavier_normal_, bias zeros,
    BatchNorm affine params = ones / zeros (frozen)."""
    std = (2.0 / (n + n)) ** 0.5                      # xavier_normal_ (square)
    w1 = std * jax.random.normal(key, (n, n), dtype=jnp.float32)
    b1 = jnp.zeros((n,), dtype=jnp.float32)
    gamma = jnp.ones((n,), dtype=jnp.float32)
    beta = jnp.zeros((n,), dtype=jnp.float32)
    return w1, b1, gamma, beta


if __name__ == "__main__":
    B, n = 8, 32
    key = jax.random.PRNGKey(0)
    k_x, k_w = jax.random.split(key)

    x = jax.random.normal(k_x, (B, n), dtype=jnp.float32)
    w1, b1, gamma, beta = init_params(n, k_w)

    out = infomax_ica_forward(x, w1, b1, gamma, beta)
    out = jax.block_until_ready(out)
    assert out.shape == (B, n)

    # Reference 1: same bf16 MXU-operand precision as the kernel (tight check).
    y_bf = jnp.dot(x.astype(jnp.bfloat16), w1.astype(jnp.bfloat16).T,
                   preferred_element_type=jnp.float32) + b1
    m_bf = y_bf.mean(axis=0, keepdims=True)
    v_bf = ((y_bf - m_bf) ** 2).mean(axis=0, keepdims=True)
    ref_bf = (y_bf - m_bf) / jnp.sqrt(v_bf + BN_EPS) * gamma + beta
    assert jnp.allclose(out, ref_bf, atol=2e-3, rtol=2e-3), \
        "mismatch vs bf16-matched reference"

    # Reference 2: exact f32 module semantics (loose check: bf16 MXU operands).
    y32 = x @ w1.T + b1
    m32 = y32.mean(axis=0, keepdims=True)
    v32 = ((y32 - m32) ** 2).mean(axis=0, keepdims=True)
    ref32 = (y32 - m32) / jnp.sqrt(v32 + BN_EPS) * gamma + beta
    assert jnp.allclose(out, ref32, atol=8e-2, rtol=8e-2), \
        "mismatch vs f32 module reference"

    print("KERNEL_OK")
</pallas_src>

<mosaic_0001>
module attributes {stable_mosaic.version = 11 : i64} {
  func.func @infomax_ica_kernel(%arg0: i32, %arg1: memref<8x128xbf16, #tpu.memory_space<vmem>>, %arg2: memref<128x128xbf16, #tpu.memory_space<vmem>>, %arg3: memref<1x128xf32, #tpu.memory_space<vmem>>, %arg4: memref<1x128xf32, #tpu.memory_space<vmem>>, %arg5: memref<8x128xf32, #tpu.memory_space<vmem>>) attributes {dimension_semantics = [#tpu.dimension_semantics<parallel>], iteration_bounds = array<i64: 1>, scalar_prefetch = 0 : i64, scratch_operands = 0 : i64, tpu.core_type = #tpu.core_type<tc>, window_params = [{pipeline_mode = #tpu.pipeline_mode<synchronous>, transform_indices = @transform_0, window_bounds = array<i64: 8, 128>}, {transform_indices = @transform_1, window_bounds = array<i64: 128, 128>}, {transform_indices = @transform_2, window_bounds = array<i64: 1, 128>}, {transform_indices = @transform_3, window_bounds = array<i64: 1, 128>}, {transform_indices = @transform_4, window_bounds = array<i64: 8, 128>}]} {
    %c0 = arith.constant 0 : index
    %c0_0 = arith.constant 0 : index
    %0 = vector.load %arg1[%c0, %c0_0] : memref<8x128xbf16, #tpu.memory_space<vmem>>, vector<8x128xbf16>
    %c0_1 = arith.constant 0 : index
    %c0_2 = arith.constant 0 : index
    %1 = vector.load %arg2[%c0_1, %c0_2] : memref<128x128xbf16, #tpu.memory_space<vmem>>, vector<128x128xbf16>
    %cst = arith.constant dense<0.000000e+00> : vector<8x128xf32>
    %2 = tpu.matmul %0, %1, %cst {dimension_numbers = #tpu.dot_dimension_numbers<[1], [1], [0], [0], [0, 0, 1, 0], [], []>} : vector<8x128xbf16>, vector<128x128xbf16>, vector<8x128xf32> -> vector<8x128xf32>
    %cst_3 = arith.constant dense<0.000000e+00> : vector<128xf32>
    %3 = vector.multi_reduction <add>, %2, %cst_3 [0] : vector<8x128xf32> to vector<128xf32>
    %4 = vector.shape_cast %3 : vector<128xf32> to vector<1x128xf32>
    %5 = arith.mulf %2, %2 : vector<8x128xf32>
    %cst_4 = arith.constant dense<0.000000e+00> : vector<128xf32>
    %6 = vector.multi_reduction <add>, %5, %cst_4 [0] : vector<8x128xf32> to vector<128xf32>
    %7 = vector.shape_cast %6 : vector<128xf32> to vector<1x128xf32>
    %cst_5 = arith.constant 1.250000e-01 : f32
    %8 = vector.broadcast %cst_5 : f32 to vector<1x128xf32>
    %9 = arith.mulf %4, %8 : vector<1x128xf32>
    %cst_6 = arith.constant 1.250000e-01 : f32
    %10 = vector.broadcast %cst_6 : f32 to vector<1x128xf32>
    %11 = arith.mulf %7, %10 : vector<1x128xf32>
    %12 = arith.mulf %9, %9 : vector<1x128xf32>
    %13 = arith.subf %11, %12 : vector<1x128xf32>
    %cst_7 = arith.constant 0.000000e+00 : f32
    %14 = vector.broadcast %cst_7 : f32 to vector<1x128xf32>
    %15 = arith.maximumf %13, %14 : vector<1x128xf32>
    %cst_8 = arith.constant 9.99999974E-6 : f32
    %16 = vector.broadcast %cst_8 : f32 to vector<1x128xf32>
    %17 = arith.addf %15, %16 : vector<1x128xf32>
    %18 = math.rsqrt %17 : vector<1x128xf32>
    %c0_9 = arith.constant 0 : index
    %c0_10 = arith.constant 0 : index
    %19 = vector.load %arg3[%c0_9, %c0_10] : memref<1x128xf32, #tpu.memory_space<vmem>>, vector<1x128xf32>
    %20 = arith.mulf %18, %19 : vector<1x128xf32>
    %c0_11 = arith.constant 0 : index
    %c0_12 = arith.constant 0 : index
    %21 = vector.load %arg4[%c0_11, %c0_12] : memref<1x128xf32, #tpu.memory_space<vmem>>, vector<1x128xf32>
    %22 = arith.mulf %9, %20 : vector<1x128xf32>
    %23 = arith.subf %21, %22 : vector<1x128xf32>
    %24 = vector.broadcast %20 : vector<1x128xf32> to vector<8x128xf32>
    %25 = arith.mulf %2, %24 : vector<8x128xf32>
    %26 = vector.broadcast %23 : vector<1x128xf32> to vector<8x128xf32>
    %27 = arith.addf %25, %26 : vector<8x128xf32>
    %c0_13 = arith.constant 0 : index
    %c0_14 = arith.constant 0 : index
    %28 = vector.load %arg5[%c0_13, %c0_14] : memref<8x128xf32, #tpu.memory_space<vmem>>, vector<8x128xf32>
    tpu.vector_store %arg5[%c0_13, %c0_14], %27 {strides = array<i32>} : memref<8x128xf32, #tpu.memory_space<vmem>>, vector<8x128xf32>,
    return
  }
  func.func @transform_0(%arg0: i32) -> (i32, i32) {
    %c0_i32 = arith.constant 0 : i32
    %c0_i32_0 = arith.constant 0 : i32
    %c0_i32_1 = arith.constant 0 : i32
    return %c0_i32, %c0_i32_0 : i32, i32
  }
  func.func @transform_1(%arg0: i32) -> (i32, i32) {
    %c0_i32 = arith.constant 0 : i32
    %c0_i32_0 = arith.constant 0 : i32
    return %arg0, %c0_i32 : i32, i32
  }
  func.func @transform_2(%arg0: i32) -> (i32, i32) {
    %c0_i32 = arith.constant 0 : i32
    %c0_i32_0 = arith.constant 0 : i32
    return %c0_i32, %arg0 : i32, i32
  }
  func.func @transform_3(%arg0: i32) -> (i32, i32) {
    %c0_i32 = arith.constant 0 : i32
    %c0_i32_0 = arith.constant 0 : i32
    return %c0_i32, %arg0 : i32, i32
  }
  func.func @transform_4(%arg0: i32) -> (i32, i32) {
    %c0_i32 = arith.constant 0 : i32
    %c0_i32_0 = arith.constant 0 : i32
    return %c0_i32, %arg0 : i32, i32
  }
}

</mosaic_0001>

<llo_original>
// kernel: tpu_custom_call.1
$region0: #{tpu_custom_call.1}
  #allocation0 [shape = 'u32[]', space=smem, size = 0x4, offset = 0x4, fixed_abs, tag = 'smem constant byte address 0x4 - core index']
  #allocation1 [shape = 'u32[144,128]{1,0:T(1,128)}', space=vmem, size = 0x12000, scoped, tag = 'internal scratch']
  %s0 = inlined_call_operand.hbm [shape: bf16[8,128], index: 0, kind: input, shape index: {}]
  %s1 = inlined_call_operand.hbm [shape: bf16[128,128], index: 1, kind: input, shape index: {}]
  %s2 = inlined_call_operand.vmem [shape: f32[1,128], index: 2, kind: input, shape index: {}]
  %s3 = inlined_call_operand.vmem [shape: f32[1,128], index: 3, kind: input, shape index: {}]
  %s4 = inlined_call_operand.hbm [shape: f32[8,128], index: 4, kind: output, shape index: {}]
  %s5 = sld [smem:[#allocation0]]
  $region34: #{tpu_custom_call.1} parent=0
    _
  %s7 = ssub.s32 1, %s5
  %s8 = scalar_select 0, %s7, %s5
  $region1: #{tpu_custom_call.1} parent=0
    #allocation2 [shape = 'u8[2048]{0}', space=vmem, size = 0x800, scoped, tag = 'input window, operand 0, single buffered']
    #allocation3 [shape = 's32[1]{0}', space=sflag, size = 0x4, scoped, tag = 'scoped memory for tpu_custom_call.1']
    #allocation4 [shape = 's32[1]{0}', space=sflag, size = 0x4, scoped, tag = 'scoped memory for tpu_custom_call.1']
    #allocation5 [shape = 'u8[32768]{0}', space=vmem, size = 0x8000, scoped, tag = 'input window, operand 1, single buffered']
    #allocation6 [shape = 's32[1]{0}', space=sflag, size = 0x4, scoped, tag = 'scoped memory for tpu_custom_call.1']
    #allocation7 [shape = 'u8[4096]{0}', space=vmem, size = 0x1000, scoped, tag = 'output window, operand 0, single buffered']
    %9 = vsyncpa [#allocation3], 0
    %10 = vsyncpa [#allocation6], 0
    %11 = vsyncpa [#allocation4], 0
    // Predicated region
    $region2: #{tpu_custom_call.1} parent=1 // pred_check
      _
    $region3: #{tpu_custom_call.1} parent=1 // pred_check_branch
      %13 = sbr.rel (0) target = $region5
    $region4: #{tpu_custom_call.1} parent=1 // pred_region
      %s15 = ssub.s32 64, 64
      %16 = vsyncadd [#allocation3], %s15
      %s18 = sshll.u32 [#allocation2], 4
      %s19 = int_to_ptr.vmem [resolvable:$true] %s18
      %21 = dma.hbm_to_vmem [thread:$0]  %s0, 64, %s19, [#allocation3]
    $region5: #{tpu_custom_call.1} parent=1 // pred_fallthru
      _
    // Predicated region
    $region6: #{tpu_custom_call.1} parent=1 // pred_check
      _
    $region7: #{tpu_custom_call.1} parent=1 // pred_check_branch
      %23 = sbr.rel (0) target = $region9
    $region8: #{tpu_custom_call.1} parent=1 // pred_region
      %s25 = ssub.s32 1024, 1024
      %26 = vsyncadd [#allocation6], %s25
      %s27 = sshll.u32 [#allocation5], 4
      %s28 = int_to_ptr.vmem [resolvable:$true] %s27
      %33 = dma.hbm_to_vmem [thread:$0]  %s1, 1024, %s28, [#allocation6], 64, 64, 4
    $region9: #{tpu_custom_call.1} parent=1 // pred_fallthru
      _
    // Predicated region
    $region10: #{tpu_custom_call.1} parent=1 // pred_check
      _
    $region11: #{tpu_custom_call.1} parent=1 // pred_check_branch
      %35 = sbr.rel (0) target = $region13
    $region12: #{tpu_custom_call.1} parent=1 // pred_region
      _
    $region13: #{tpu_custom_call.1} parent=1 // pred_fallthru
      _
    // Predicated region
    $region14: #{tpu_custom_call.1} parent=1 // pred_check
      _
    $region15: #{tpu_custom_call.1} parent=1 // pred_check_branch
      %37 = sbr.rel (0) target = $region17
    $region16: #{tpu_custom_call.1} parent=1 // pred_region
      _
    $region17: #{tpu_custom_call.1} parent=1 // pred_fallthru
      _
    // Predicated region
    $region18: #{tpu_custom_call.1} parent=1 // pred_check
      _
    $region19: #{tpu_custom_call.1} parent=1 // pred_check_branch
      %39 = sbr.rel (0) target = $region21
    $region20: #{tpu_custom_call.1} parent=1 // pred_region
      %40 = dma.done [#allocation3], 64
    $region21: #{tpu_custom_call.1} parent=1 // pred_fallthru
      _
    // Predicated region
    $region22: #{tpu_custom_call.1} parent=1 // pred_check
      _
    $region23: #{tpu_custom_call.1} parent=1 // pred_check_branch
      %42 = sbr.rel (0) target = $region25
    $region24: #{tpu_custom_call.1} parent=1 // pred_region
      %43 = dma.done [#allocation6], 1024
    $region25: #{tpu_custom_call.1} parent=1 // pred_fallthru
      _
    %v45 = vld [vmem:[#allocation2] sm:$0xf]
    %v46 = vld [vmem:[#allocation5] sm:$0xf]
    %v47 = vld [vmem:[#allocation5 + $0x4] sm:$0xf]
    %v48 = vld [vmem:[#allocation5 + $0x8] sm:$0xf]
    %v49 = vld [vmem:[#allocation5 + $0xc] sm:$0xf]
    %v50 = vld [vmem:[#allocation5 + $0x10] sm:$0xf]
    %v51 = vld [vmem:[#allocation5 + $0x14] sm:$0xf]
    %v52 = vld [vmem:[#allocation5 + $0x18] sm:$0xf]
    %v53 = vld [vmem:[#allocation5 + $0x1c] sm:$0xf]
    %v54 = vld [vmem:[#allocation5 + $0x20] sm:$0xf]
    %v55 = vld [vmem:[#allocation5 + $0x24] sm:$0xf]
    %v56 = vld [vmem:[#allocation5 + $0x28] sm:$0xf]
    %v57 = vld [vmem:[#allocation5 + $0x2c] sm:$0xf]
    %v58 = vld [vmem:[#allocation5 + $0x30] sm:$0xf]
    %v59 = vld [vmem:[#allocation5 + $0x34] sm:$0xf]
    %v60 = vld [vmem:[#allocation5 + $0x38] sm:$0xf]
    %v61 = vld [vmem:[#allocation5 + $0x3c] sm:$0xf]
    %v78 = vunpack.c.l.b16 %v46
    %v79 = vunpack.c.l.b16 %v47
    %v80 = vunpack.c.l.b16 %v48
    %v81 = vunpack.c.l.b16 %v49
    %v82 = vunpack.c.l.b16 %v50
    %v83 = vunpack.c.l.b16 %v51
    %v84 = vunpack.c.l.b16 %v52
    %v85 = vunpack.c.l.b16 %v53
    %v86 = vunpack.c.l.b16 %v54
    %v87 = vunpack.c.l.b16 %v55
    %v88 = vunpack.c.l.b16 %v56
    %v89 = vunpack.c.l.b16 %v57
    %v90 = vunpack.c.l.b16 %v58
    %v91 = vunpack.c.l.b16 %v59
    %v92 = vunpack.c.l.b16 %v60
    %v93 = vunpack.c.l.b16 %v61
    %v94 = vpack.c.b16 %v79, %v78
    %v95 = vpack.c.b16 %v81, %v80
    %v96 = vpack.c.b16 %v83, %v82
    %v97 = vpack.c.b16 %v85, %v84
    %v98 = vpack.c.b16 %v87, %v86
    %v99 = vpack.c.b16 %v89, %v88
    %v100 = vpack.c.b16 %v91, %v90
    %v101 = vpack.c.b16 %v93, %v92
    %110 = vmatprep.subr.bf16.mxu0 0
    %111 = vmatpush1.bf16.xpose.msra.mxu0 %v94
    %112 = vmatprep.subr.bf16.mxu0 0
    %113 = vmatpush1.bf16.xpose.msra.mxu0 %v95
    %114 = vmatprep.subr.bf16.mxu0 0
    %115 = vmatpush1.bf16.xpose.msra.mxu0 %v96
    %116 = vmatprep.subr.bf16.mxu0 0
    %117 = vmatpush1.bf16.xpose.msra.mxu0 %v97
    %118 = vmatprep.subr.bf16.mxu0 0
    %119 = vmatpush1.bf16.xpose.msra.mxu0 %v98
    %120 = vmatprep.subr.bf16.mxu0 0
    %121 = vmatpush1.bf16.xpose.msra.mxu0 %v99
    %122 = vmatprep.subr.bf16.mxu0 0
    %123 = vmatpush1.bf16.xpose.msra.mxu0 %v100
    %124 = vmatprep.subr.bf16.mxu0 0
    %125 = vmatpush1.bf16.xpose.msra.mxu0 %v101
    %126 = vmatprep.subr.bf16.mxu0 0
    %127 = vmatpush1.bf16.xpose.msra.mxu0 0
    %128 = vmatprep.subr.bf16.mxu0 0
    %129 = vmatpush1.bf16.xpose.msra.mxu0 0
    %130 = vmatprep.subr.bf16.mxu0 0
    %131 = vmatpush1.bf16.xpose.msra.mxu0 0
    %132 = vmatprep.subr.bf16.mxu0 0
    %133 = vmatpush1.bf16.xpose.msra.mxu0 0
    %134 = vmatprep.subr.bf16.mxu0 0
    %135 = vmatpush1.bf16.xpose.msra.mxu0 0
    %136 = vmatprep.subr.bf16.mxu0 0
    %137 = vmatpush1.bf16.xpose.msra.mxu0 0
    %138 = vmatprep.subr.bf16.mxu0 0
    %139 = vmatpush1.bf16.xpose.msra.mxu0 0
    %140 = vmatprep.subr.bf16.mxu0 0
    %141 = vmatpush1.bf16.xpose.msra.mxu0 0
    %142 = vmatprep.mubr.bf16.mxu0 0
    %143 = vmatmul.mubr.bf16.gmra.mrb[0].mxu0 %v45
    %v144 = vpop.f32.mrb[0].mxu0
    %v145 = vadd.f32 0.0, %v144
    %v146 = vpop.f32.mrb[0].mxu0
    %v147 = vpop.f32.mrb[0].mxu0
    %v148 = vpop.f32.mrb[0].mxu0
    %149 = vdwg.mxu0
    %v150 = vrot.slane %v145, 4
    %v151 = vadd.f32 %v145, %v150
    %v152 = vrot.slane %v151, 2
    %v153 = vadd.f32 %v151, %v152
    %v154 = vrot.slane %v153, 1
    %v155 = vadd.f32 %v153, %v154
    %v156 = vmul.f32 %v145, %v145
    %v157 = vrot.slane %v156, 4
    %v158 = vadd.f32 %v156, %v157
    %v159 = vrot.slane %v158, 2
    %v160 = vadd.f32 %v158, %v159
    %v161 = vrot.slane %v160, 1
    %v162 = vadd.f32 %v160, %v161
    %v163 = vmul.f32 %v155, 0.125
    %v164 = vmul.f32 %v162, 0.125
    %v165 = vmul.f32 %v163, %v163
    %v166 = vsub.f32 %v164, %v165
    %v167 = vmax.f32 %v166, 0.0
    %v168 = vadd.f32 %v167, 1e-05
    %v169 = vrsqrt.pop %v168
    %v170 = vld [vmem:[%s2] sm:$0x1]
    %v171 = vmul.f32 %v169, %v170
    %v172 = vld [vmem:[%s3] sm:$0x1]
    %v173 = vmul.f32 %v163, %v171
    %v174 = vsub.f32 %v172, %v173
    %v175 = vlaneseq
    %v176 = vshrl.u32 %v175, 7
    %v177 = vsub.s32 0, %v176
    %v178 = vrot.slane %v171, %v177
    %v179 = vmul.f32 %v145, %v178
    %v181 = vlaneseq
    %v182 = vshrl.u32 %v181, 7
    %v183 = vsub.s32 0, %v182
    %v184 = vrot.slane %v174, %v183
    %v186 = vadd.f32 %v179, %v184
    %187 = vst [vmem:[#allocation7] sm:$0xff] %v186
    // Predicated region
    $region26: #{tpu_custom_call.1} parent=1 // pred_check
      _
    $region27: #{tpu_custom_call.1} parent=1 // pred_check_branch
      %189 = sbr.rel (0) target = $region29
    $region28: #{tpu_custom_call.1} parent=1 // pred_region
      %s191 = ssub.s32 128, 128
      %192 = vsyncadd [#allocation4], %s191
      %s194 = sshll.u32 [#allocation7], 4
      %s195 = int_to_ptr.vmem [resolvable:$true] %s194
      %197 = dma.vmem_to_hbm [thread:$0]  %s195, 128, %s4, [#allocation4]
    $region29: #{tpu_custom_call.1} parent=1 // pred_fallthru
      _
    // Predicated region
    $region30: #{tpu_custom_call.1} parent=1 // pred_check
      _
    $region31: #{tpu_custom_call.1} parent=1 // pred_check_branch
      %199 = sbr.rel (0) target = $region33
    $region32: #{tpu_custom_call.1} parent=1 // pred_region
      %200 = dma.done [#allocation4], 128
    $region33: #{tpu_custom_call.1} parent=1 // pred_fallthru
      _
    %201 = vsyncpa [#allocation3], 1
    %202 = vsyncpa [#allocation6], 1
    %203 = vsyncpa [#allocation4], 1

</llo_original>
